<compile_context>
chip_gen: v7x
topology: tpu7x:2x2x1
jax: 0.10.0
libtpu: 0.0.40
codegen_flags: <defaults>
</compile_context>

<pallas_src>
import numpy as np
import jax
import jax.numpy as jnp
from jax.experimental import pallas as pl
from jax.experimental.pallas import tpu as pltpu

# ---------------- problem sizes (small, consistent with the module) ----------
N, C_IN, H, W = 2, 4, 16, 16          # "data" blob, NCHW
C_OUT = 8                             # Convolution num_output
KH = KW = 3                           # kernel_size
PAD = 1                               # pad
POOL = 2                              # MaxPool2d kernel_size = stride = 2
HO, WO = H // POOL, W // POOL
FEAT = C_OUT * HO * WO                # 512 = x.view(len(x), -1) size (CHW order)
NUM_CLASSES = 10                      # InnerProduct num_output

HP = H + 2 * PAD                      # padded height (18)
KPACK = C_IN * W                      # 64 : packed conv contraction (one strip)
WCOLS = W * C_OUT                     # 128: lane-dense conv-output width
HALF = (W // 2) * C_OUT               # 64 : even-w / odd-w half width


# ---------------- fused kernel -------------------------------------------------
def net_fused_kernel(x_ref, wconv_ref, bconv_ref, wfc_ref, bfc_ref,
                     o_ref, xs_ref, xflat_ref):
    """Full Net forward for BOTH batch elements; everything stays in VMEM.

    x_ref     : (H*N, KPACK)        input, row = h*N + n, lane = c*W + w
    wconv_ref : (KH, KPACK, WCOLS)  banded channel-packed conv weight
    bconv_ref : (1, WCOLS)          conv bias tiled to the output lane layout
    wfc_ref   : (FEAT, NUM_CLASSES) FC weight, rows in (ho, wo, cout) order
    bfc_ref   : (1, NUM_CLASSES)
    o_ref     : (N, NUM_CLASSES)    softmax output
    xs_ref    : (HP*N, KPACK) f32   zero-row-padded input scratch
    xflat_ref : (N, FEAT) f32       staged flat features for the single FC dot
    """
    # -- Pad rows (h = -1 and h = H) must be zero; interior rows are fully
    #    overwritten below, so only these two tiny stores are needed.
    xs_ref[pl.ds(0, N), :] = jnp.zeros((N, KPACK), jnp.float32)
    xs_ref[pl.ds((HP - 1) * N, N), :] = jnp.zeros((N, KPACK), jnp.float32)
    # -- One dense store of the (already lane-dense) input into the interior.
    xs_ref[pl.ds(PAD * N, H * N), :] = x_ref[...]

    # -- Convolution(3x3, s=1, p=1): one banded matmul per filter row, kept
    #    adjacent with no VPU ops interleaved (MRB accumulation on v7x).
    #    M = H*N = 32, K = KPACK = 64, N = WCOLS = 128.
    acc = jnp.zeros((H * N, WCOLS), jnp.float32)
    for kh in range(KH):                          # 3 MXU pushes total
        acc += jnp.dot(xs_ref[pl.ds(kh * N, H * N), :], wconv_ref[kh],
                       preferred_element_type=jnp.float32)
    act = jnp.maximum(acc + bconv_ref[...], 0.0)  # bias + ReLU

    # -- MaxPool2d(2, 2).  Even-w outputs sit in lanes [0,64), odd-w in
    #    [64,128) (by weight construction), so w-pooling is a max of the two
    #    contiguous lane halves.  Rows are grouped [h=2r,n=0..1 | h=2r+1,...],
    #    so h-pooling is a max of two 2-row groups.  The pooled (2,64) rows
    #    are staged straight into the flat FC activation at lane offset r*64,
    #    giving feature order (ho, wo, cout) = what wfc was permuted to.
    wmax = jnp.maximum(act[:, :HALF], act[:, HALF:])          # (32, 64)
    for r in range(HO):                                       # 8 small stores
        top = wmax[POOL * N * r: POOL * N * r + N]            # h = 2r
        bot = wmax[POOL * N * r + N: POOL * N * r + 2 * N]    # h = 2r + 1
        xflat_ref[:, pl.ds(r * HALF, HALF)] = jnp.maximum(top, bot)

    # -- InnerProduct (y = x W^T + b): ONE (N,512)x(512,10) matmul, fused with
    #    Softmax(dim=-1).
    logits = jnp.dot(xflat_ref[...], wfc_ref[...],
                     preferred_element_type=jnp.float32) + bfc_ref[...]
    m = jnp.max(logits, axis=-1, keepdims=True)
    e = jnp.exp(logits - m)
    inv = pl.reciprocal(jnp.sum(e, axis=-1, keepdims=True), approx=False)
    o_ref[...] = e * inv


# ---------------- Net.forward equivalent ---------------------------------------
def net_forward(x_nchw, params):
    """Returns the dict of terminal blobs, matching Net.forward semantics."""
    wconv, bconv, wfc, bfc = params
    # Wrapper-side relayout (free layout plumbing): NCHW -> (H*N, C_IN*W),
    # row = h*N + n, lane = c*W + w.
    x_rows = jnp.transpose(x_nchw, (2, 0, 1, 3)).reshape(H * N, C_IN * W)
    prob = pl.pallas_call(
        net_fused_kernel,
        out_shape=jax.ShapeDtypeStruct((N, NUM_CLASSES), jnp.float32),
        grid=(1,),                                    # single fused step
        in_specs=[
            pl.BlockSpec((H * N, KPACK), lambda i: (0, 0)),
            pl.BlockSpec((KH, KPACK, WCOLS), lambda i: (0, 0, 0)),
            pl.BlockSpec((1, WCOLS), lambda i: (0, 0)),
            pl.BlockSpec((FEAT, NUM_CLASSES), lambda i: (0, 0)),
            pl.BlockSpec((1, NUM_CLASSES), lambda i: (0, 0)),
        ],
        out_specs=pl.BlockSpec((N, NUM_CLASSES), lambda i: (0, 0)),
        scratch_shapes=[pltpu.VMEM((HP * N, KPACK), jnp.float32),
                        pltpu.VMEM((N, FEAT), jnp.float32)],
        compiler_params=pltpu.CompilerParams(
            dimension_semantics=("arbitrary",)),
    )(x_rows, wconv, bconv, wfc, bfc)
    # TODO(synk): prototxt parsing / protobuf graph construction / .caffemodel
    # loading in Net.__init__ are host-side plumbing, not kernel work.
    return {"prob": prob}


# ---------------- deterministic parameter init ---------------------------------
def init_params(key):
    """caffe-style fillers (weight: gaussian std=0.01, bias: constant 0),
    re-laid-out once at init so the kernel needs no runtime relayouts:
      * conv weight -> per-kh banded (KPACK=64, 128) matrices over the packed
        channel strip (lane = c*W + wp); output columns ordered
        (w parity, w//2, cout) so MaxPool along w is a max of two contiguous
        lane halves; taps into the zero w-padding are simply dropped,
      * conv bias   -> tiled to that 128-wide output lane layout,
      * FC weight   -> rows regrouped from CHW-major to (ho, wo, cout) order
        and flattened to (512, 10) so one matmul consumes the staged pooled
        activation directly.
    Returns f32 weights (bf16 MXU operands are a further option but are gated
    on a tolerance check vs the f32 reference).
    """
    k1, k2 = jax.random.split(key)
    w_conv = 0.01 * np.asarray(
        jax.random.normal(k1, (C_OUT, C_IN, KH, KW), jnp.float32))
    b_conv = np.zeros((C_OUT,), np.float32)          # constant(0) filler
    w_fc = 0.01 * np.asarray(
        jax.random.normal(k2, (NUM_CLASSES, FEAT), jnp.float32))
    b_fc = np.zeros((1, NUM_CLASSES), np.float32)    # constant(0) filler

    # Banded, channel-packed conv weight:
    #   wband[kh, c*W + wp, col(w, cout)] = W[cout, c, kh, kw],  wp = w+kw-PAD
    #   col(w, cout) = (w % 2) * HALF + (w // 2) * C_OUT + cout
    wband = np.zeros((KH, C_IN, W, WCOLS), np.float32)
    for kw in range(KW):
        w_k = np.transpose(w_conv[:, :, :, kw], (2, 1, 0))   # (KH, C_IN, C_OUT)
        for w in range(W):
            wp = w + kw - PAD
            if 0 <= wp < W:          # taps into the zero w-padding contribute 0
                col = (w % 2) * HALF + (w // 2) * C_OUT
                wband[:, :, wp, col:col + C_OUT] = w_k
    wconv = jnp.asarray(wband.reshape(KH, KPACK, WCOLS))

    bconv = jnp.asarray(np.tile(b_conv.reshape(1, C_OUT), (1, W)))   # (1, 128)

    # FC weight: torch flattens the pooled NCHW tensor as cout*HO*WO + ho*WO + wo.
    # Kernel feature order is ho*HALF + wo*C_OUT + cout.
    wfc = (w_fc.reshape(NUM_CLASSES, C_OUT, HO, WO)
           .transpose(2, 3, 1, 0)                 # (HO, WO, C_OUT, NUM_CLASSES)
           .reshape(FEAT, NUM_CLASSES))
    wfc = jnp.asarray(np.ascontiguousarray(wfc))
    bfc = jnp.asarray(b_fc)
    return wconv, bconv, wfc, bfc


# ---------------- pure-JAX reference (same math, for a tolerance check) --------
def net_reference(x, w_conv, b_conv, w_fc, b_fc):
    y = jax.lax.conv_general_dilated(
        x, w_conv, window_strides=(1, 1), padding=((PAD, PAD), (PAD, PAD)),
        dimension_numbers=("NCHW", "OIHW", "NCHW"))
    y = jnp.maximum(y + b_conv.reshape(1, C_OUT, 1, 1), 0.0)
    y = jax.lax.reduce_window(y, -jnp.inf, jax.lax.max,
                              (1, 1, POOL, POOL), (1, 1, POOL, POOL), "VALID")
    logits = y.reshape(N, -1) @ w_fc.T + b_fc
    return jax.nn.softmax(logits, axis=-1)


if __name__ == "__main__":
    key = jax.random.PRNGKey(0)
    kx, kp = jax.random.split(key)
    x = jax.random.normal(kx, (N, C_IN, H, W), jnp.float32)   # "data" blob, NCHW

    # Raw (torch-layout) parameters, used for both kernel re-layout & reference.
    k1, k2 = jax.random.split(kp)
    params = init_params(kp)

    out = jax.jit(net_forward)(x, params)
    prob = jax.block_until_ready(out["prob"])
    assert prob.shape == (N, NUM_CLASSES)

    # Correctness check against a pure-JAX f32 reference.
    w_conv_raw = 0.01 * np.asarray(
        jax.random.normal(k1, (C_OUT, C_IN, KH, KW), jnp.float32))
    w_fc_raw = 0.01 * np.asarray(
        jax.random.normal(k2, (NUM_CLASSES, FEAT), jnp.float32))
    ref = net_reference(x, jnp.asarray(w_conv_raw),
                        jnp.zeros((C_OUT,), jnp.float32),
                        jnp.asarray(w_fc_raw),
                        jnp.zeros((1, NUM_CLASSES), jnp.float32))
    assert np.allclose(np.asarray(prob), np.asarray(ref), atol=1e-5, rtol=1e-4)

    print("KERNEL_OK")
</pallas_src>

<mosaic_0001>
module attributes {stable_mosaic.version = 11 : i64} {
  func.func @net_fused_kernel(%arg0: i32, %arg1: memref<32x64xf32, #tpu.memory_space<vmem>>, %arg2: memref<3x64x128xf32, #tpu.memory_space<vmem>>, %arg3: memref<1x128xf32, #tpu.memory_space<vmem>>, %arg4: memref<512x10xf32, #tpu.memory_space<vmem>>, %arg5: memref<1x10xf32, #tpu.memory_space<vmem>>, %arg6: memref<2x10xf32, #tpu.memory_space<vmem>>, %arg7: memref<36x64xf32, #tpu.memory_space<vmem>>, %arg8: memref<2x512xf32, #tpu.memory_space<vmem>>) attributes {dimension_semantics = [#tpu.dimension_semantics<arbitrary>], iteration_bounds = array<i64: 1>, scalar_prefetch = 0 : i64, scratch_operands = 2 : i64, tpu.core_type = #tpu.core_type<tc>, window_params = [{pipeline_mode = #tpu.pipeline_mode<synchronous>, transform_indices = @transform_0, window_bounds = array<i64: 32, 64>}, {pipeline_mode = #tpu.pipeline_mode<synchronous>, transform_indices = @transform_1, window_bounds = array<i64: 3, 64, 128>}, {pipeline_mode = #tpu.pipeline_mode<synchronous>, transform_indices = @transform_2, window_bounds = array<i64: 1, 128>}, {pipeline_mode = #tpu.pipeline_mode<synchronous>, transform_indices = @transform_3, window_bounds = array<i64: 512, 10>}, {pipeline_mode = #tpu.pipeline_mode<synchronous>, transform_indices = @transform_4, window_bounds = array<i64: 1, 10>}, {pipeline_mode = #tpu.pipeline_mode<synchronous>, transform_indices = @transform_5, window_bounds = array<i64: 2, 10>}]} {
    %cst = arith.constant 0.000000e+00 : f32
    %0 = vector.broadcast %cst : f32 to vector<2x64xf32>
    %c0 = arith.constant 0 : index
    %c0_0 = arith.constant 0 : index
    %1 = vector.load %arg7[%c0, %c0_0] : memref<36x64xf32, #tpu.memory_space<vmem>>, vector<2x64xf32>
    tpu.vector_store %arg7[%c0, %c0_0], %0 {strides = array<i32>} : memref<36x64xf32, #tpu.memory_space<vmem>>, vector<2x64xf32>,
    %cst_1 = arith.constant 0.000000e+00 : f32
    %2 = vector.broadcast %cst_1 : f32 to vector<2x64xf32>
    %c34 = arith.constant 34 : index
    %c0_2 = arith.constant 0 : index
    %3 = vector.load %arg7[%c34, %c0_2] : memref<36x64xf32, #tpu.memory_space<vmem>>, vector<2x64xf32>
    tpu.vector_store %arg7[%c34, %c0_2], %2 {strides = array<i32>} : memref<36x64xf32, #tpu.memory_space<vmem>>, vector<2x64xf32>,
    %c0_3 = arith.constant 0 : index
    %c0_4 = arith.constant 0 : index
    %4 = vector.load %arg1[%c0_3, %c0_4] : memref<32x64xf32, #tpu.memory_space<vmem>>, vector<32x64xf32>
    %c2 = arith.constant 2 : index
    %c0_5 = arith.constant 0 : index
    %5 = vector.load %arg7[%c2, %c0_5] : memref<36x64xf32, #tpu.memory_space<vmem>>, vector<32x64xf32>
    tpu.vector_store %arg7[%c2, %c0_5], %4 {strides = array<i32>} : memref<36x64xf32, #tpu.memory_space<vmem>>, vector<32x64xf32>,
    %cst_6 = arith.constant 0.000000e+00 : f32
    %6 = vector.broadcast %cst_6 : f32 to vector<32x128xf32>
    %c0_7 = arith.constant 0 : index
    %c0_8 = arith.constant 0 : index
    %7 = vector.load %arg7[%c0_7, %c0_8] : memref<36x64xf32, #tpu.memory_space<vmem>>, vector<32x64xf32>
    %c0_9 = arith.constant 0 : index
    %c0_10 = arith.constant 0 : index
    %c0_11 = arith.constant 0 : index
    %8 = vector.load %arg2[%c0_9, %c0_10, %c0_11] : memref<3x64x128xf32, #tpu.memory_space<vmem>>, vector<1x64x128xf32>
    %9 = vector.shape_cast %8 : vector<1x64x128xf32> to vector<64x128xf32>
    %cst_12 = arith.constant dense<0.000000e+00> : vector<32x128xf32>
    %10 = tpu.matmul %7, %9, %cst_12 {dimension_numbers = #tpu.dot_dimension_numbers<[1], [0], [0], [1], [0, 0, 1, 1], [], []>} : vector<32x64xf32>, vector<64x128xf32>, vector<32x128xf32> -> vector<32x128xf32>
    %11 = arith.addf %6, %10 : vector<32x128xf32>
    %c2_13 = arith.constant 2 : index
    %c0_14 = arith.constant 0 : index
    %12 = vector.load %arg7[%c2_13, %c0_14] : memref<36x64xf32, #tpu.memory_space<vmem>>, vector<32x64xf32>
    %c1 = arith.constant 1 : index
    %c0_15 = arith.constant 0 : index
    %c0_16 = arith.constant 0 : index
    %13 = vector.load %arg2[%c1, %c0_15, %c0_16] : memref<3x64x128xf32, #tpu.memory_space<vmem>>, vector<1x64x128xf32>
    %14 = vector.shape_cast %13 : vector<1x64x128xf32> to vector<64x128xf32>
    %cst_17 = arith.constant dense<0.000000e+00> : vector<32x128xf32>
    %15 = tpu.matmul %12, %14, %cst_17 {dimension_numbers = #tpu.dot_dimension_numbers<[1], [0], [0], [1], [0, 0, 1, 1], [], []>} : vector<32x64xf32>, vector<64x128xf32>, vector<32x128xf32> -> vector<32x128xf32>
    %16 = arith.addf %11, %15 : vector<32x128xf32>
    %c4 = arith.constant 4 : index
    %c0_18 = arith.constant 0 : index
    %17 = vector.load %arg7[%c4, %c0_18] : memref<36x64xf32, #tpu.memory_space<vmem>>, vector<32x64xf32>
    %c2_19 = arith.constant 2 : index
    %c0_20 = arith.constant 0 : index
    %c0_21 = arith.constant 0 : index
    %18 = vector.load %arg2[%c2_19, %c0_20, %c0_21] : memref<3x64x128xf32, #tpu.memory_space<vmem>>, vector<1x64x128xf32>
    %19 = vector.shape_cast %18 : vector<1x64x128xf32> to vector<64x128xf32>
    %cst_22 = arith.constant dense<0.000000e+00> : vector<32x128xf32>
    %20 = tpu.matmul %17, %19, %cst_22 {dimension_numbers = #tpu.dot_dimension_numbers<[1], [0], [0], [1], [0, 0, 1, 1], [], []>} : vector<32x64xf32>, vector<64x128xf32>, vector<32x128xf32> -> vector<32x128xf32>
    %21 = arith.addf %16, %20 : vector<32x128xf32>
    %c0_23 = arith.constant 0 : index
    %c0_24 = arith.constant 0 : index
    %22 = vector.load %arg3[%c0_23, %c0_24] : memref<1x128xf32, #tpu.memory_space<vmem>>, vector<1x128xf32>
    %23 = vector.broadcast %22 : vector<1x128xf32> to vector<32x128xf32>
    %24 = arith.addf %21, %23 : vector<32x128xf32>
    %cst_25 = arith.constant 0.000000e+00 : f32
    %25 = vector.broadcast %cst_25 : f32 to vector<32x128xf32>
    %26 = arith.maximumf %24, %25 : vector<32x128xf32>
    %27 = vector.extract_strided_slice %26 {offsets = [0, 0], sizes = [32, 64], strides = [1, 1]} : vector<32x128xf32> to vector<32x64xf32>
    %28 = vector.extract_strided_slice %26 {offsets = [0, 64], sizes = [32, 64], strides = [1, 1]} : vector<32x128xf32> to vector<32x64xf32>
    %29 = arith.maximumf %27, %28 : vector<32x64xf32>
    %30 = vector.extract_strided_slice %29 {offsets = [0, 0], sizes = [2, 64], strides = [1, 1]} : vector<32x64xf32> to vector<2x64xf32>
    %31 = vector.extract_strided_slice %29 {offsets = [2, 0], sizes = [2, 64], strides = [1, 1]} : vector<32x64xf32> to vector<2x64xf32>
    %32 = arith.maximumf %30, %31 : vector<2x64xf32>
    %c0_26 = arith.constant 0 : index
    %c0_27 = arith.constant 0 : index
    %33 = vector.load %arg8[%c0_26, %c0_27] : memref<2x512xf32, #tpu.memory_space<vmem>>, vector<2x64xf32>
    tpu.vector_store %arg8[%c0_26, %c0_27], %32 {strides = array<i32>} : memref<2x512xf32, #tpu.memory_space<vmem>>, vector<2x64xf32>,
    %34 = vector.extract_strided_slice %29 {offsets = [4, 0], sizes = [2, 64], strides = [1, 1]} : vector<32x64xf32> to vector<2x64xf32>
    %35 = vector.extract_strided_slice %29 {offsets = [6, 0], sizes = [2, 64], strides = [1, 1]} : vector<32x64xf32> to vector<2x64xf32>
    %36 = arith.maximumf %34, %35 : vector<2x64xf32>
    %c0_28 = arith.constant 0 : index
    %c64 = arith.constant 64 : index
    %37 = vector.load %arg8[%c0_28, %c64] : memref<2x512xf32, #tpu.memory_space<vmem>>, vector<2x64xf32>
    tpu.vector_store %arg8[%c0_28, %c64], %36 {strides = array<i32>} : memref<2x512xf32, #tpu.memory_space<vmem>>, vector<2x64xf32>,
    %38 = vector.extract_strided_slice %29 {offsets = [8, 0], sizes = [2, 64], strides = [1, 1]} : vector<32x64xf32> to vector<2x64xf32>
    %39 = vector.extract_strided_slice %29 {offsets = [10, 0], sizes = [2, 64], strides = [1, 1]} : vector<32x64xf32> to vector<2x64xf32>
    %40 = arith.maximumf %38, %39 : vector<2x64xf32>
    %c0_29 = arith.constant 0 : index
    %c128 = arith.constant 128 : index
    %41 = vector.load %arg8[%c0_29, %c128] : memref<2x512xf32, #tpu.memory_space<vmem>>, vector<2x64xf32>
    tpu.vector_store %arg8[%c0_29, %c128], %40 {strides = array<i32>} : memref<2x512xf32, #tpu.memory_space<vmem>>, vector<2x64xf32>,
    %42 = vector.extract_strided_slice %29 {offsets = [12, 0], sizes = [2, 64], strides = [1, 1]} : vector<32x64xf32> to vector<2x64xf32>
    %43 = vector.extract_strided_slice %29 {offsets = [14, 0], sizes = [2, 64], strides = [1, 1]} : vector<32x64xf32> to vector<2x64xf32>
    %44 = arith.maximumf %42, %43 : vector<2x64xf32>
    %c0_30 = arith.constant 0 : index
    %c192 = arith.constant 192 : index
    %45 = vector.load %arg8[%c0_30, %c192] : memref<2x512xf32, #tpu.memory_space<vmem>>, vector<2x64xf32>
    tpu.vector_store %arg8[%c0_30, %c192], %44 {strides = array<i32>} : memref<2x512xf32, #tpu.memory_space<vmem>>, vector<2x64xf32>,
    %46 = vector.extract_strided_slice %29 {offsets = [16, 0], sizes = [2, 64], strides = [1, 1]} : vector<32x64xf32> to vector<2x64xf32>
    %47 = vector.extract_strided_slice %29 {offsets = [18, 0], sizes = [2, 64], strides = [1, 1]} : vector<32x64xf32> to vector<2x64xf32>
    %48 = arith.maximumf %46, %47 : vector<2x64xf32>
    %c0_31 = arith.constant 0 : index
    %c256 = arith.constant 256 : index
    %49 = vector.load %arg8[%c0_31, %c256] : memref<2x512xf32, #tpu.memory_space<vmem>>, vector<2x64xf32>
    tpu.vector_store %arg8[%c0_31, %c256], %48 {strides = array<i32>} : memref<2x512xf32, #tpu.memory_space<vmem>>, vector<2x64xf32>,
    %50 = vector.extract_strided_slice %29 {offsets = [20, 0], sizes = [2, 64], strides = [1, 1]} : vector<32x64xf32> to vector<2x64xf32>
    %51 = vector.extract_strided_slice %29 {offsets = [22, 0], sizes = [2, 64], strides = [1, 1]} : vector<32x64xf32> to vector<2x64xf32>
    %52 = arith.maximumf %50, %51 : vector<2x64xf32>
    %c0_32 = arith.constant 0 : index
    %c320 = arith.constant 320 : index
    %53 = vector.load %arg8[%c0_32, %c320] : memref<2x512xf32, #tpu.memory_space<vmem>>, vector<2x64xf32>
    tpu.vector_store %arg8[%c0_32, %c320], %52 {strides = array<i32>} : memref<2x512xf32, #tpu.memory_space<vmem>>, vector<2x64xf32>,
    %54 = vector.extract_strided_slice %29 {offsets = [24, 0], sizes = [2, 64], strides = [1, 1]} : vector<32x64xf32> to vector<2x64xf32>
    %55 = vector.extract_strided_slice %29 {offsets = [26, 0], sizes = [2, 64], strides = [1, 1]} : vector<32x64xf32> to vector<2x64xf32>
    %56 = arith.maximumf %54, %55 : vector<2x64xf32>
    %c0_33 = arith.constant 0 : index
    %c384 = arith.constant 384 : index
    %57 = vector.load %arg8[%c0_33, %c384] : memref<2x512xf32, #tpu.memory_space<vmem>>, vector<2x64xf32>
    tpu.vector_store %arg8[%c0_33, %c384], %56 {strides = array<i32>} : memref<2x512xf32, #tpu.memory_space<vmem>>, vector<2x64xf32>,
    %58 = vector.extract_strided_slice %29 {offsets = [28, 0], sizes = [2, 64], strides = [1, 1]} : vector<32x64xf32> to vector<2x64xf32>
    %59 = vector.extract_strided_slice %29 {offsets = [30, 0], sizes = [2, 64], strides = [1, 1]} : vector<32x64xf32> to vector<2x64xf32>
    %60 = arith.maximumf %58, %59 : vector<2x64xf32>
    %c0_34 = arith.constant 0 : index
    %c448 = arith.constant 448 : index
    %61 = vector.load %arg8[%c0_34, %c448] : memref<2x512xf32, #tpu.memory_space<vmem>>, vector<2x64xf32>
    tpu.vector_store %arg8[%c0_34, %c448], %60 {strides = array<i32>} : memref<2x512xf32, #tpu.memory_space<vmem>>, vector<2x64xf32>,
    %c0_35 = arith.constant 0 : index
    %c0_36 = arith.constant 0 : index
    %62 = vector.load %arg8[%c0_35, %c0_36] : memref<2x512xf32, #tpu.memory_space<vmem>>, vector<2x512xf32>
    %c0_37 = arith.constant 0 : index
    %c0_38 = arith.constant 0 : index
    %63 = vector.load %arg4[%c0_37, %c0_38] : memref<512x10xf32, #tpu.memory_space<vmem>>, vector<512x10xf32>
    %cst_39 = arith.constant dense<0.000000e+00> : vector<2x10xf32>
    %64 = tpu.matmul %62, %63, %cst_39 {dimension_numbers = #tpu.dot_dimension_numbers<[1], [0], [0], [1], [0, 0, 1, 1], [], []>} : vector<2x512xf32>, vector<512x10xf32>, vector<2x10xf32> -> vector<2x10xf32>
    %c0_40 = arith.constant 0 : index
    %c0_41 = arith.constant 0 : index
    %65 = vector.load %arg5[%c0_40, %c0_41] : memref<1x10xf32, #tpu.memory_space<vmem>>, vector<1x10xf32>
    %66 = vector.broadcast %65 : vector<1x10xf32> to vector<2x10xf32>
    %67 = arith.addf %64, %66 : vector<2x10xf32>
    %cst_42 = arith.constant dense<0xFF800000> : vector<2xf32>
    %68 = vector.multi_reduction <maximumf>, %67, %cst_42 [1] : vector<2x10xf32> to vector<2xf32>
    %69 = vector.shape_cast %68 : vector<2xf32> to vector<2x1xf32>
    %70 = vector.broadcast %69 : vector<2x1xf32> to vector<2x10xf32>
    %71 = arith.subf %67, %70 : vector<2x10xf32>
    %72 = math.exp %71 : vector<2x10xf32>
    %cst_43 = arith.constant dense<0.000000e+00> : vector<2xf32>
    %73 = vector.multi_reduction <add>, %72, %cst_43 [1] : vector<2x10xf32> to vector<2xf32>
    %74 = vector.shape_cast %73 : vector<2xf32> to vector<2x1xf32>
    %75 = tpu.reciprocal %74 : vector<2x1xf32> -> vector<2x1xf32>
    %76 = vector.broadcast %75 : vector<2x1xf32> to vector<2x10xf32>
    %77 = arith.mulf %72, %76 : vector<2x10xf32>
    %c0_44 = arith.constant 0 : index
    %c0_45 = arith.constant 0 : index
    %78 = vector.load %arg6[%c0_44, %c0_45] : memref<2x10xf32, #tpu.memory_space<vmem>>, vector<2x10xf32>
    tpu.vector_store %arg6[%c0_44, %c0_45], %77 {strides = array<i32>} : memref<2x10xf32, #tpu.memory_space<vmem>>, vector<2x10xf32>,
    return
  }
  func.func @transform_0(%arg0: i32) -> (i32, i32) {
    %c0_i32 = arith.constant 0 : i32
    %c0_i32_0 = arith.constant 0 : i32
    %c0_i32_1 = arith.constant 0 : i32
    return %c0_i32, %c0_i32_0 : i32, i32
  }
  func.func @transform_1(%arg0: i32) -> (i32, i32, i32) {
    %c0_i32 = arith.constant 0 : i32
    %c0_i32_0 = arith.constant 0 : i32
    %c0_i32_1 = arith.constant 0 : i32
    %c0_i32_2 = arith.constant 0 : i32
    return %c0_i32, %c0_i32_0, %c0_i32_1 : i32, i32, i32
  }
  func.func @transform_2(%arg0: i32) -> (i32, i32) {
    %c0_i32 = arith.constant 0 : i32
    %c0_i32_0 = arith.constant 0 : i32
    %c0_i32_1 = arith.constant 0 : i32
    return %c0_i32, %c0_i32_0 : i32, i32
  }
  func.func @transform_3(%arg0: i32) -> (i32, i32) {
    %c0_i32 = arith.constant 0 : i32
    %c0_i32_0 = arith.constant 0 : i32
    %c0_i32_1 = arith.constant 0 : i32
    return %c0_i32, %c0_i32_0 : i32, i32
  }
  func.func @transform_4(%arg0: i32) -> (i32, i32) {
    %c0_i32 = arith.constant 0 : i32
    %c0_i32_0 = arith.constant 0 : i32
    %c0_i32_1 = arith.constant 0 : i32
    return %c0_i32, %c0_i32_0 : i32, i32
  }
  func.func @transform_5(%arg0: i32) -> (i32, i32) {
    %c0_i32 = arith.constant 0 : i32
    %c0_i32_0 = arith.constant 0 : i32
    %c0_i32_1 = arith.constant 0 : i32
    return %c0_i32, %c0_i32_0 : i32, i32
  }
}

</mosaic_0001>

<llo_original>
// kernel: net_forward.1
$region0: #{net_forward.1}
  #allocation0 [shape = 'u32[]', space=smem, size = 0x4, offset = 0x4, fixed_abs, tag = 'smem constant byte address 0x4 - core index']
  #allocation1 [shape = 'u32[144,128]{1,0:T(1,128)}', space=vmem, size = 0x12000, scoped, tag = 'internal scratch']
  #allocation2 [shape = 'f32[36,64]{1,0:T(8,128)}', space=vmem, size = 0x5000, scoped, tag = 'scratch operand']
  #allocation3 [shape = 'f32[2,512]{1,0:T(2,128)}', space=vmem, size = 0x1000, scoped, tag = 'scratch operand']
  %s0 = inlined_call_operand.vmem [shape: f32[32,64], index: 0, kind: input, shape index: {}]
  %s1 = inlined_call_operand.vmem [shape: f32[3,64,128], index: 1, kind: input, shape index: {}]
  %s2 = inlined_call_operand.vmem [shape: f32[1,128], index: 2, kind: input, shape index: {}]
  %s3 = inlined_call_operand.vmem [shape: f32[512,10], index: 3, kind: input, shape index: {}]
  %s4 = inlined_call_operand.vmem [shape: f32[1,10], index: 4, kind: input, shape index: {}]
  %s5 = inlined_call_operand.hbm [shape: f32[2,10], index: 5, kind: output, shape index: {}]
  %s6 = sld [smem:[#allocation0]]
  $region30: #{net_forward.1} parent=0
    _
  %s8 = ssub.s32 1, %s6
  %s9 = scalar_select 0, %s8, %s6
  $region1: #{net_forward.1} parent=0
    #allocation4 [shape = 'u8[1024]{0}', space=vmem, size = 0x400, scoped, tag = 'output window, operand 0, single buffered']
    #allocation5 [shape = 's32[1]{0}', space=sflag, size = 0x4, scoped, tag = 'scoped memory for net_forward.1']
    %10 = vsyncpa [#allocation5], 0
    // Predicated region
    $region2: #{net_forward.1} parent=1 // pred_check
      _
    $region3: #{net_forward.1} parent=1 // pred_check_branch
      %12 = sbr.rel (0) target = $region5
    $region4: #{net_forward.1} parent=1 // pred_region
      _
    $region5: #{net_forward.1} parent=1 // pred_fallthru
      _
    // Predicated region
    $region6: #{net_forward.1} parent=1 // pred_check
      _
    $region7: #{net_forward.1} parent=1 // pred_check_branch
      %14 = sbr.rel (0) target = $region9
    $region8: #{net_forward.1} parent=1 // pred_region
      _
    $region9: #{net_forward.1} parent=1 // pred_fallthru
      _
    // Predicated region
    $region10: #{net_forward.1} parent=1 // pred_check
      _
    $region11: #{net_forward.1} parent=1 // pred_check_branch
      %16 = sbr.rel (0) target = $region13
    $region12: #{net_forward.1} parent=1 // pred_region
      _
    $region13: #{net_forward.1} parent=1 // pred_fallthru
      _
    // Predicated region
    $region14: #{net_forward.1} parent=1 // pred_check
      _
    $region15: #{net_forward.1} parent=1 // pred_check_branch
      %18 = sbr.rel (0) target = $region17
    $region16: #{net_forward.1} parent=1 // pred_region
      _
    $region17: #{net_forward.1} parent=1 // pred_fallthru
      _
    // Predicated region
    $region18: #{net_forward.1} parent=1 // pred_check
      _
    $region19: #{net_forward.1} parent=1 // pred_check_branch
      %20 = sbr.rel (0) target = $region21
    $region20: #{net_forward.1} parent=1 // pred_region
      _
    $region21: #{net_forward.1} parent=1 // pred_fallthru
      _
    %vm21 = vcmask 517120
    %22 = vst.msk [vmem:[#allocation2] sm:$0x3] %vm21, 0.0
    %23 = vst.msk [vmem:[#allocation2 + $0x22] sm:$0x3] %vm21, 0.0
    %v24 = vld [vmem:[%s0] sm:$0xff]
    %v25 = vld [vmem:[%s0 + $0x8] sm:$0xff]
    %v26 = vld [vmem:[%s0 + $0x10] sm:$0xff]
    %v27 = vld [vmem:[%s0 + $0x18] sm:$0xff]
    %vm28 = vcmask 523264
    %29 = vst.msk [vmem:[#allocation2 + $0x2] sm:$0xff] %vm28, %v24
    %30 = vst.msk [vmem:[#allocation2 + $0xa] sm:$0xff] %vm28, %v25
    %31 = vst.msk [vmem:[#allocation2 + $0x12] sm:$0xff] %vm28, %v26
    %32 = vst.msk [vmem:[#allocation2 + $0x1a] sm:$0xff] %vm28, %v27
    %v33 = vld [vmem:[#allocation2] sm:$0xff]
    %v34 = vld [vmem:[#allocation2 + $0x8] sm:$0xff]
    %v35 = vld [vmem:[#allocation2 + $0x10] sm:$0xff]
    %v36 = vld [vmem:[#allocation2 + $0x18] sm:$0xff]
    %v37 = vld [vmem:[%s1] sm:$0xff]
    %v38 = vld [vmem:[%s1 + $0x8] sm:$0xff]
    %v39 = vld [vmem:[%s1 + $0x10] sm:$0xff]
    %v40 = vld [vmem:[%s1 + $0x18] sm:$0xff]
    %v41 = vld [vmem:[%s1 + $0x20] sm:$0xff]
    %v42 = vld [vmem:[%s1 + $0x28] sm:$0xff]
    %v43 = vld [vmem:[%s1 + $0x30] sm:$0xff]
    %v44 = vld [vmem:[%s1 + $0x38] sm:$0xff]
    %v45 = vld [vmem:[#allocation2 + $0x2] sm:$0xff]
    %v46 = vld [vmem:[#allocation2 + $0xa] sm:$0xff]
    %v47 = vld [vmem:[#allocation2 + $0x12] sm:$0xff]
    %v48 = vld [vmem:[#allocation2 + $0x1a] sm:$0xff]
    %s49 = scalar_lea.vmem %s1, 64
    %v50 = vld [vmem:[%s49] sm:$0xff]
    %v51 = vld [vmem:[%s49 + $0x8] sm:$0xff]
    %v52 = vld [vmem:[%s49 + $0x10] sm:$0xff]
    %v53 = vld [vmem:[%s49 + $0x18] sm:$0xff]
    %v54 = vld [vmem:[%s49 + $0x20] sm:$0xff]
    %v55 = vld [vmem:[%s49 + $0x28] sm:$0xff]
    %v56 = vld [vmem:[%s49 + $0x30] sm:$0xff]
    %v57 = vld [vmem:[%s49 + $0x38] sm:$0xff]
    %v59 = vsel %vm28, %v45, 0
    %v62 = vsel %vm28, %v46, 0
    %v65 = vsel %vm28, %v47, 0
    %v68 = vsel %vm28, %v48, 0
    %70 = vmatprep.subr.mxu0 0.0
    %71 = vmatpush1.msra.mxu0 %v50
    %72 = vmatprep.subr.mxu0 0.0
    %73 = vmatpush1.msra.mxu0 %v51
    %74 = vmatprep.subr.mxu0 0.0
    %75 = vmatpush1.msra.mxu0 %v52
    %76 = vmatprep.subr.mxu0 0.0
    %77 = vmatpush1.msra.mxu0 %v53
    %78 = vmatprep.subr.mxu0 0.0
    %79 = vmatpush1.msra.mxu0 %v54
    %80 = vmatprep.subr.mxu0 0.0
    %81 = vmatpush1.msra.mxu0 %v55
    %82 = vmatprep.subr.mxu0 0.0
    %83 = vmatpush1.msra.mxu0 %v56
    %84 = vmatprep.subr.mxu0 0.0
    %85 = vmatpush1.msra.mxu0 %v57
    %86 = vmatprep.subr.mxu0 0.0
    %87 = vmatpush1.msra.mxu0 0.0
    %88 = vmatprep.subr.mxu0 0.0
    %89 = vmatpush1.msra.mxu0 0.0
    %90 = vmatprep.subr.mxu0 0.0
    %91 = vmatpush1.msra.mxu0 0.0
    %92 = vmatprep.subr.mxu0 0.0
    %93 = vmatpush1.msra.mxu0 0.0
    %94 = vmatprep.subr.mxu0 0.0
    %95 = vmatpush1.msra.mxu0 0.0
    %96 = vmatprep.subr.mxu0 0.0
    %97 = vmatpush1.msra.mxu0 0.0
    %98 = vmatprep.subr.mxu0 0.0
    %99 = vmatpush1.msra.mxu0 0.0
    %100 = vmatprep.subr.mxu0 0.0
    %101 = vmatpush1.msra.mxu0 0.0
    %102 = vmatprep.subr.mxu0 0.0
    %103 = vmatpush1.msra.mxu0 0.0
    %104 = vmatprep.subr.mxu0 0.0
    %105 = vmatpush1.msra.mxu0 0.0
    %106 = vmatprep.subr.mxu0 0.0
    %107 = vmatpush1.msra.mxu0 0.0
    %108 = vmatprep.subr.mxu0 0.0
    %109 = vmatpush1.msra.mxu0 0.0
    %110 = vmatprep.subr.mxu0 0.0
    %111 = vmatpush1.msra.mxu0 0.0
    %112 = vmatprep.subr.mxu0 0.0
    %113 = vmatpush1.msra.mxu0 0.0
    %114 = vmatprep.subr.mxu0 0.0
    %115 = vmatpush1.msra.mxu0 0.0
    %116 = vmatprep.subr.mxu0 0.0
    %117 = vmatpush1.msra.mxu0 0.0
    %118 = vmatprep.subr.mxu0 0.0
    %119 = vmatpush1.msra.mxu0 0.0
    %120 = vmatprep.subr.mxu0 0.0
    %121 = vmatpush1.msra.mxu0 0.0
    %122 = vmatprep.subr.mxu0 0.0
    %123 = vmatpush1.msra.mxu0 0.0
    %124 = vmatprep.subr.mxu0 0.0
    %125 = vmatpush1.msra.mxu0 0.0
    %126 = vmatprep.subr.mxu0 0.0
    %127 = vmatpush1.msra.mxu0 0.0
    %128 = vmatprep.subr.mxu0 0.0
    %129 = vmatpush1.msra.mxu0 0.0
    %130 = vmatprep.subr.mxu0 0.0
    %131 = vmatpush1.msra.mxu0 0.0
    %132 = vmatprep.subr.mxu0 0.0
    %133 = vmatpush1.msra.mxu0 0.0
    %134 = vmatprep.mubr.f32.mxu0 0.0
    %135 = vmatmul.mubr.f32.gmra.mrb[0].mxu0 %v59
    %v136 = vpop.f32.mrb[0].mxu0
    %v137 = vadd.f32 0.0, %v136
    %v138 = vpop.f32.mrb[0].mxu0
    %139 = vmatprep.mubr.f32.mxu0 0.0
    %140 = vmatmul.mubr.f32.gmra.mrb[0].mxu0 %v62
    %v141 = vpop.f32.mrb[0].mxu0
    %v142 = vadd.f32 0.0, %v141
    %v143 = vpop.f32.mrb[0].mxu0
    %144 = vmatprep.mubr.f32.mxu0 0.0
    %145 = vmatmul.mubr.f32.gmra.mrb[0].mxu0 %v65
    %v146 = vpop.f32.mrb[0].mxu0
    %v147 = vadd.f32 0.0, %v146
    %v148 = vpop.f32.mrb[0].mxu0
    %149 = vmatprep.mubr.f32.mxu0 0.0
    %150 = vmatmul.mubr.f32.gmra.mrb[0].mxu0 %v68
    %v151 = vpop.f32.mrb[0].mxu0
    %v152 = vadd.f32 0.0, %v151
    %v153 = vpop.f32.mrb[0].mxu0
    %154 = vdwg.mxu0
    %v156 = vsel %vm28, %v33, 0
    %v159 = vsel %vm28, %v34, 0
    %v162 = vsel %vm28, %v35, 0
    %v165 = vsel %vm28, %v36, 0
    %167 = vmatprep.subr.mxu0 0.0
    %168 = vmatpush1.msra.mxu0 %v37
    %169 = vmatprep.subr.mxu0 0.0
    %170 = vmatpush1.msra.mxu0 %v38
    %171 = vmatprep.subr.mxu0 0.0
    %172 = vmatpush1.msra.mxu0 %v39
    %173 = vmatprep.subr.mxu0 0.0
    %174 = vmatpush1.msra.mxu0 %v40
    %175 = vmatprep.subr.mxu0 0.0
    %176 = vmatpush1.msra.mxu0 %v41
    %177 = vmatprep.subr.mxu0 0.0
    %178 = vmatpush1.msra.mxu0 %v42
    %179 = vmatprep.subr.mxu0 0.0
    %180 = vmatpush1.msra.mxu0 %v43
    %181 = vmatprep.subr.mxu0 0.0
    %182 = vmatpush1.msra.mxu0 %v44
    %183 = vmatprep.subr.mxu0 0.0
    %184 = vmatpush1.msra.mxu0 0.0
    %185 = vmatprep.subr.mxu0 0.0
    %186 = vmatpush1.msra.mxu0 0.0
    %187 = vmatprep.subr.mxu0 0.0
    %188 = vmatpush1.msra.mxu0 0.0
    %189 = vmatprep.subr.mxu0 0.0
    %190 = vmatpush1.msra.mxu0 0.0
    %191 = vmatprep.subr.mxu0 0.0
    %192 = vmatpush1.msra.mxu0 0.0
    %193 = vmatprep.subr.mxu0 0.0
    %194 = vmatpush1.msra.mxu0 0.0
    %195 = vmatprep.subr.mxu0 0.0
    %196 = vmatpush1.msra.mxu0 0.0
    %197 = vmatprep.subr.mxu0 0.0
    %198 = vmatpush1.msra.mxu0 0.0
    %199 = vmatprep.subr.mxu0 0.0
    %200 = vmatpush1.msra.mxu0 0.0
    %201 = vmatprep.subr.mxu0 0.0
    %202 = vmatpush1.msra.mxu0 0.0
    %203 = vmatprep.subr.mxu0 0.0
    %204 = vmatpush1.msra.mxu0 0.0
    %205 = vmatprep.subr.mxu0 0.0
    %206 = vmatpush1.msra.mxu0 0.0
    %207 = vmatprep.subr.mxu0 0.0
    %208 = vmatpush1.msra.mxu0 0.0
    %209 = vmatprep.subr.mxu0 0.0
    %210 = vmatpush1.msra.mxu0 0.0
    %211 = vmatprep.subr.mxu0 0.0
    %212 = vmatpush1.msra.mxu0 0.0
    %213 = vmatprep.subr.mxu0 0.0
    %214 = vmatpush1.msra.mxu0 0.0
    %215 = vmatprep.subr.mxu0 0.0
    %216 = vmatpush1.msra.mxu0 0.0
    %217 = vmatprep.subr.mxu0 0.0
    %218 = vmatpush1.msra.mxu0 0.0
    %219 = vmatprep.subr.mxu0 0.0
    %220 = vmatpush1.msra.mxu0 0.0
    %221 = vmatprep.subr.mxu0 0.0
    %222 = vmatpush1.msra.mxu0 0.0
    %223 = vmatprep.subr.mxu0 0.0
    %224 = vmatpush1.msra.mxu0 0.0
    %225 = vmatprep.subr.mxu0 0.0
    %226 = vmatpush1.msra.mxu0 0.0
    %227 = vmatprep.subr.mxu0 0.0
    %228 = vmatpush1.msra.mxu0 0.0
    %229 = vmatprep.subr.mxu0 0.0
    %230 = vmatpush1.msra.mxu0 0.0
    %231 = vmatprep.mubr.f32.mxu0 0.0
    %232 = vmatmul.mubr.f32.gmra.mrb[0].mxu0 %v156
    %v233 = vpop.f32.mrb[0].mxu0
    %v234 = vadd.f32 %v137, %v233
    %v235 = vpop.f32.mrb[0].mxu0
    %236 = vmatprep.mubr.f32.mxu0 0.0
    %237 = vmatmul.mubr.f32.gmra.mrb[0].mxu0 %v159
    %v238 = vpop.f32.mrb[0].mxu0
    %v239 = vadd.f32 %v142, %v238
    %v240 = vpop.f32.mrb[0].mxu0
    %241 = vmatprep.mubr.f32.mxu0 0.0
    %242 = vmatmul.mubr.f32.gmra.mrb[0].mxu0 %v162
    %v243 = vpop.f32.mrb[0].mxu0
    %v244 = vadd.f32 %v147, %v243
    %v245 = vpop.f32.mrb[0].mxu0
    %246 = vmatprep.mubr.f32.mxu0 0.0
    %247 = vmatmul.mubr.f32.gmra.mrb[0].mxu0 %v165
    %v248 = vpop.f32.mrb[0].mxu0
    %v249 = vadd.f32 %v152, %v248
    %v250 = vpop.f32.mrb[0].mxu0
    %251 = vdwg.mxu0
    %v252 = vld [vmem:[#allocation2 + $0x4] sm:$0xff]
    %v253 = vld [vmem:[#allocation2 + $0xc] sm:$0xff]
    %v254 = vld [vmem:[#allocation2 + $0x14] sm:$0xff]
    %v255 = vld [vmem:[#allocation2 + $0x1c] sm:$0xff]
    %s256 = scalar_lea.vmem %s1, 128
    %v257 = vld [vmem:[%s256] sm:$0xff]
    %v258 = vld [vmem:[%s256 + $0x8] sm:$0xff]
    %v259 = vld [vmem:[%s256 + $0x10] sm:$0xff]
    %v260 = vld [vmem:[%s256 + $0x18] sm:$0xff]
    %v261 = vld [vmem:[%s256 + $0x20] sm:$0xff]
    %v262 = vld [vmem:[%s256 + $0x28] sm:$0xff]
    %v263 = vld [vmem:[%s256 + $0x30] sm:$0xff]
    %v264 = vld [vmem:[%s256 + $0x38] sm:$0xff]
    %v266 = vsel %vm28, %v252, 0
    %v269 = vsel %vm28, %v253, 0
    %v272 = vsel %vm28, %v254, 0
    %v275 = vsel %vm28, %v255, 0
    %277 = vmatprep.subr.mxu0 0.0
    %278 = vmatpush1.msra.mxu0 %v257
    %279 = vmatprep.subr.mxu0 0.0
    %280 = vmatpush1.msra.mxu0 %v258
    %281 = vmatprep.subr.mxu0 0.0
    %282 = vmatpush1.msra.mxu0 %v259
    %283 = vmatprep.subr.mxu0 0.0
    %284 = vmatpush1.msra.mxu0 %v260
    %285 = vmatprep.subr.mxu0 0.0
    %286 = vmatpush1.msra.mxu0 %v261
    %287 = vmatprep.subr.mxu0 0.0
    %288 = vmatpush1.msra.mxu0 %v262
    %289 = vmatprep.subr.mxu0 0.0
    %290 = vmatpush1.msra.mxu0 %v263
    %291 = vmatprep.subr.mxu0 0.0
    %292 = vmatpush1.msra.mxu0 %v264
    %293 = vmatprep.subr.mxu0 0.0
    %294 = vmatpush1.msra.mxu0 0.0
    %295 = vmatprep.subr.mxu0 0.0
    %296 = vmatpush1.msra.mxu0 0.0
    %297 = vmatprep.subr.mxu0 0.0
    %298 = vmatpush1.msra.mxu0 0.0
    %299 = vmatprep.subr.mxu0 0.0
    %300 = vmatpush1.msra.mxu0 0.0
    %301 = vmatprep.subr.mxu0 0.0
    %302 = vmatpush1.msra.mxu0 0.0
    %303 = vmatprep.subr.mxu0 0.0
    %304 = vmatpush1.msra.mxu0 0.0
    %305 = vmatprep.subr.mxu0 0.0
    %306 = vmatpush1.msra.mxu0 0.0
    %307 = vmatprep.subr.mxu0 0.0
    %308 = vmatpush1.msra.mxu0 0.0
    %309 = vmatprep.subr.mxu0 0.0
    %310 = vmatpush1.msra.mxu0 0.0
    %311 = vmatprep.subr.mxu0 0.0
    %312 = vmatpush1.msra.mxu0 0.0
    %313 = vmatprep.subr.mxu0 0.0
    %314 = vmatpush1.msra.mxu0 0.0
    %315 = vmatprep.subr.mxu0 0.0
    %316 = vmatpush1.msra.mxu0 0.0
    %317 = vmatprep.subr.mxu0 0.0
    %318 = vmatpush1.msra.mxu0 0.0
    %319 = vmatprep.subr.mxu0 0.0
    %320 = vmatpush1.msra.mxu0 0.0
    %321 = vmatprep.subr.mxu0 0.0
    %322 = vmatpush1.msra.mxu0 0.0
    %323 = vmatprep.subr.mxu0 0.0
    %324 = vmatpush1.msra.mxu0 0.0
    %325 = vmatprep.subr.mxu0 0.0
    %326 = vmatpush1.msra.mxu0 0.0
    %327 = vmatprep.subr.mxu0 0.0
    %328 = vmatpush1.msra.mxu0 0.0
    %329 = vmatprep.subr.mxu0 0.0
    %330 = vmatpush1.msra.mxu0 0.0
    %331 = vmatprep.subr.mxu0 0.0
    %332 = vmatpush1.msra.mxu0 0.0
    %333 = vmatprep.subr.mxu0 0.0
    %334 = vmatpush1.msra.mxu0 0.0
    %335 = vmatprep.subr.mxu0 0.0
    %336 = vmatpush1.msra.mxu0 0.0
    %337 = vmatprep.subr.mxu0 0.0
    %338 = vmatpush1.msra.mxu0 0.0
    %339 = vmatprep.subr.mxu0 0.0
    %340 = vmatpush1.msra.mxu0 0.0
    %341 = vmatprep.mubr.f32.mxu0 0.0
    %342 = vmatmul.mubr.f32.gmra.mrb[0].mxu0 %v266
    %v343 = vpop.f32.mrb[0].mxu0
    %v344 = vadd.f32 0.0, %v343
    %v345 = vpop.f32.mrb[0].mxu0
    %346 = vmatprep.mubr.f32.mxu0 0.0
    %347 = vmatmul.mubr.f32.gmra.mrb[0].mxu0 %v269
    %v348 = vpop.f32.mrb[0].mxu0
    %v349 = vadd.f32 0.0, %v348
    %v350 = vpop.f32.mrb[0].mxu0
    %351 = vmatprep.mubr.f32.mxu0 0.0
    %352 = vmatmul.mubr.f32.gmra.mrb[0].mxu0 %v272
    %v353 = vpop.f32.mrb[0].mxu0
    %v354 = vadd.f32 0.0, %v353
    %v355 = vpop.f32.mrb[0].mxu0
    %356 = vmatprep.mubr.f32.mxu0 0.0
    %357 = vmatmul.mubr.f32.gmra.mrb[0].mxu0 %v275
    %v358 = vpop.f32.mrb[0].mxu0
    %v359 = vadd.f32 0.0, %v358
    %v360 = vpop.f32.mrb[0].mxu0
    %361 = vdwg.mxu0
    %v362 = vadd.f32 %v234, %v344
    %v363 = vadd.f32 %v239, %v349
    %v364 = vadd.f32 %v244, %v354
    %v365 = vadd.f32 %v249, %v359
    %v366 = vld [vmem:[%s2] sm:$0x1]
    %v368 = vlaneseq
    %v369 = vshrl.u32 %v368, 7
    %v370 = vsub.s32 0, %v369
    %v371 = vrot.slane %v366, %v370
    %v373 = vadd.f32 %v362, %v371
    %v374 = vadd.f32 %v363, %v371
    %v375 = vadd.f32 %v364, %v371
    %v376 = vadd.f32 %v365, %v371
    %v377 = vmax.f32 %v373, 0.0
    %v378 = vmax.f32 %v374, 0.0
    %v379 = vmax.f32 %v375, 0.0
    %v380 = vmax.f32 %v376, 0.0
    %385 = vrot.lane.b32.xlu0 %v377, 64
    %v386 = vpop.permute.xlu0 %385
    %387 = vrot.lane.b32.xlu0 %v378, 64
    %v388 = vpop.permute.xlu0 %387
    %389 = vrot.lane.b32.xlu0 %v379, 64
    %v390 = vpop.permute.xlu0 %389
    %391 = vrot.lane.b32.xlu0 %v380, 64
    %v392 = vpop.permute.xlu0 %391
    %v397 = vmax.f32 %v377, %v386
    %v398 = vmax.f32 %v378, %v388
    %v399 = vmax.f32 %v379, %v390
    %v400 = vmax.f32 %v380, %v392
    %v402 = vrot.slane %v397, 2
    %v404 = vmax.f32 %v397, %v402
    %405 = vst.msk [vmem:[#allocation3] sm:$0x3] %vm21, %v404
    %v407 = vcombine.high %v404, %v404
    %v409 = vunpack.c.l.s4 1983009808
    %v410 = vunpack.c.0.s8 %v409
    %v411 = vlaneseq
    %v412 = vshrl.u32 %v411, 7
    %v413 = vsub.s32 %v410, %v412
    %v414 = vrot.slane %v407, %v413
    %415 = vrot.lane.b32.xlu0 %v414, 64
    %v416 = vpop.permute.xlu0 %415
    %vm418 = vcmask 1041920
    %419 = vst.msk [vmem:[#allocation3] sm:$0x3] %vm418, %v416
    %v421 = vrot.slane %v398, 2
    %v423 = vmax.f32 %v398, %v421
    %424 = vst.msk [vmem:[#allocation3 + $0x2] sm:$0x3] %vm21, %v423
    %v426 = vcombine.high %v423, %v423
    %v428 = vunpack.c.l.s4 1983009808
    %v429 = vunpack.c.0.s8 %v428
    %v430 = vlaneseq
    %v431 = vshrl.u32 %v430, 7
    %v432 = vsub.s32 %v429, %v431
    %v433 = vrot.slane %v426, %v432
    %434 = vrot.lane.b32.xlu0 %v433, 64
    %v435 = vpop.permute.xlu0 %434
    %437 = vst.msk [vmem:[#allocation3 + $0x2] sm:$0x3] %vm418, %v435
    %v439 = vrot.slane %v399, 2
    %v441 = vmax.f32 %v399, %v439
    %442 = vst.msk [vmem:[#allocation3 + $0x4] sm:$0x3] %vm21, %v441
    %v444 = vcombine.high %v441, %v441
    %v446 = vunpack.c.l.s4 1983009808
    %v447 = vunpack.c.0.s8 %v446
    %v448 = vlaneseq
    %v449 = vshrl.u32 %v448, 7
    %v450 = vsub.s32 %v447, %v449
    %v451 = vrot.slane %v444, %v450
    %452 = vrot.lane.b32.xlu0 %v451, 64
    %v453 = vpop.permute.xlu0 %452
    %455 = vst.msk [vmem:[#allocation3 + $0x4] sm:$0x3] %vm418, %v453
    %v457 = vrot.slane %v400, 2
    %v459 = vmax.f32 %v400, %v457
    %460 = vst.msk [vmem:[#allocation3 + $0x6] sm:$0x3] %vm21, %v459
    %v462 = vcombine.high %v459, %v459
    %v464 = vunpack.c.l.s4 1983009808
    %v465 = vunpack.c.0.s8 %v464
    %v466 = vlaneseq
    %v467 = vshrl.u32 %v466, 7
    %v468 = vsub.s32 %v465, %v467
    %v469 = vrot.slane %v462, %v468
    %470 = vrot.lane.b32.xlu0 %v469, 64
    %v471 = vpop.permute.xlu0 %470
    %473 = vst.msk [vmem:[#allocation3 + $0x6] sm:$0x3] %vm418, %v471
    %v474 = vld [vmem:[#allocation3] sm:$0xff]
    %v475 = vld [vmem:[%s3] sm:$0xff]
    %v476 = vld [vmem:[%s3 + $0x8] sm:$0xff]
    %v477 = vld [vmem:[%s3 + $0x10] sm:$0xff]
    %v478 = vld [vmem:[%s3 + $0x18] sm:$0xff]
    %v479 = vld [vmem:[%s3 + $0x20] sm:$0xff]
    %v480 = vld [vmem:[%s3 + $0x28] sm:$0xff]
    %v481 = vld [vmem:[%s3 + $0x30] sm:$0xff]
    %v482 = vld [vmem:[%s3 + $0x38] sm:$0xff]
    %v483 = vld [vmem:[%s3 + $0x40] sm:$0xff]
    %v484 = vld [vmem:[%s3 + $0x48] sm:$0xff]
    %v485 = vld [vmem:[%s3 + $0x50] sm:$0xff]
    %v486 = vld [vmem:[%s3 + $0x58] sm:$0xff]
    %v487 = vld [vmem:[%s3 + $0x60] sm:$0xff]
    %v488 = vld [vmem:[%s3 + $0x68] sm:$0xff]
    %v489 = vld [vmem:[%s3 + $0x70] sm:$0xff]
    %v490 = vld [vmem:[%s3 + $0x78] sm:$0xff]
    %v491 = vld [vmem:[%s3 + $0x80] sm:$0xff]
    %v492 = vld [vmem:[%s3 + $0x88] sm:$0xff]
    %v493 = vld [vmem:[%s3 + $0x90] sm:$0xff]
    %v494 = vld [vmem:[%s3 + $0x98] sm:$0xff]
    %v495 = vld [vmem:[%s3 + $0xa0] sm:$0xff]
    %v496 = vld [vmem:[%s3 + $0xa8] sm:$0xff]
    %v497 = vld [vmem:[%s3 + $0xb0] sm:$0xff]
    %v498 = vld [vmem:[%s3 + $0xb8] sm:$0xff]
    %v499 = vld [vmem:[%s3 + $0xc0] sm:$0xff]
    %v500 = vld [vmem:[%s3 + $0xc8] sm:$0xff]
    %v501 = vld [vmem:[%s3 + $0xd0] sm:$0xff]
    %v502 = vld [vmem:[%s3 + $0xd8] sm:$0xff]
    %v503 = vld [vmem:[%s3 + $0xe0] sm:$0xff]
    %v504 = vld [vmem:[%s3 + $0xe8] sm:$0xff]
    %v505 = vld [vmem:[%s3 + $0xf0] sm:$0xff]
    %v506 = vld [vmem:[%s3 + $0xf8] sm:$0xff]
    %v507 = vld [vmem:[%s3 + $0x100] sm:$0xff]
    %v508 = vld [vmem:[%s3 + $0x108] sm:$0xff]
    %v509 = vld [vmem:[%s3 + $0x110] sm:$0xff]
    %v510 = vld [vmem:[%s3 + $0x118] sm:$0xff]
    %v511 = vld [vmem:[%s3 + $0x120] sm:$0xff]
    %v512 = vld [vmem:[%s3 + $0x128] sm:$0xff]
    %v513 = vld [vmem:[%s3 + $0x130] sm:$0xff]
    %v514 = vld [vmem:[%s3 + $0x138] sm:$0xff]
    %v515 = vld [vmem:[%s3 + $0x140] sm:$0xff]
    %v516 = vld [vmem:[%s3 + $0x148] sm:$0xff]
    %v517 = vld [vmem:[%s3 + $0x150] sm:$0xff]
    %v518 = vld [vmem:[%s3 + $0x158] sm:$0xff]
    %v519 = vld [vmem:[%s3 + $0x160] sm:$0xff]
    %v520 = vld [vmem:[%s3 + $0x168] sm:$0xff]
    %v521 = vld [vmem:[%s3 + $0x170] sm:$0xff]
    %v522 = vld [vmem:[%s3 + $0x178] sm:$0xff]
    %v523 = vld [vmem:[%s3 + $0x180] sm:$0xff]
    %v524 = vld [vmem:[%s3 + $0x188] sm:$0xff]
    %v525 = vld [vmem:[%s3 + $0x190] sm:$0xff]
    %v526 = vld [vmem:[%s3 + $0x198] sm:$0xff]
    %v527 = vld [vmem:[%s3 + $0x1a0] sm:$0xff]
    %v528 = vld [vmem:[%s3 + $0x1a8] sm:$0xff]
    %v529 = vld [vmem:[%s3 + $0x1b0] sm:$0xff]
    %v530 = vld [vmem:[%s3 + $0x1b8] sm:$0xff]
    %v531 = vld [vmem:[%s3 + $0x1c0] sm:$0xff]
    %v532 = vld [vmem:[%s3 + $0x1c8] sm:$0xff]
    %v533 = vld [vmem:[%s3 + $0x1d0] sm:$0xff]
    %v534 = vld [vmem:[%s3 + $0x1d8] sm:$0xff]
    %v535 = vld [vmem:[%s3 + $0x1e0] sm:$0xff]
    %v536 = vld [vmem:[%s3 + $0x1e8] sm:$0xff]
    %v537 = vld [vmem:[%s3 + $0x1f0] sm:$0xff]
    %v538 = vld [vmem:[%s3 + $0x1f8] sm:$0xff]
    %v539 = vld [vmem:[%s4] sm:$0x1]
    %v541 = vlaneseq
    %v542 = vshrl.u32 %v541, 7
    %v543 = vsub.s32 0, %v542
    %v544 = vrot.slane %v539, %v543
    %v547 = vcombine.high %v474, %v474
    %v549 = vunpack.c.l.s4 1983009808
    %v550 = vunpack.c.0.s8 %v549
    %v551 = vlaneseq
    %v552 = vshrl.u32 %v551, 7
    %v553 = vsub.s32 %v550, %v552
    %v554 = vrot.slane %v474, %v553
    %v556 = vunpack.c.l.s4 1983009808
    %v557 = vunpack.c.0.s8 %v556
    %v558 = vlaneseq
    %v559 = vshrl.u32 %v558, 7
    %v560 = vsub.s32 %v557, %v559
    %v561 = vrot.slane %v547, %v560
    %v562 = vcombine.high %v554, %v554
    %v563 = vcombine.high %v561, %v561
    %568 = vmatprep.subr.mxu0 0.0
    %569 = vmatpush1.msra.mxu0 %v475
    %570 = vmatprep.subr.mxu0 0.0
    %571 = vmatpush1.msra.mxu0 %v476
    %572 = vmatprep.subr.mxu0 0.0
    %573 = vmatpush1.msra.mxu0 %v477
    %574 = vmatprep.subr.mxu0 0.0
    %575 = vmatpush1.msra.mxu0 %v478
    %576 = vmatprep.subr.mxu0 0.0
    %577 = vmatpush1.msra.mxu0 %v479
    %578 = vmatprep.subr.mxu0 0.0
    %579 = vmatpush1.msra.mxu0 %v480
    %580 = vmatprep.subr.mxu0 0.0
    %581 = vmatpush1.msra.mxu0 %v481
    %582 = vmatprep.subr.mxu0 0.0
    %583 = vmatpush1.msra.mxu0 %v482
    %584 = vmatprep.subr.mxu0 0.0
    %585 = vmatpush1.msra.mxu0 %v483
    %586 = vmatprep.subr.mxu0 0.0
    %587 = vmatpush1.msra.mxu0 %v484
    %588 = vmatprep.subr.mxu0 0.0
    %589 = vmatpush1.msra.mxu0 %v485
    %590 = vmatprep.subr.mxu0 0.0
    %591 = vmatpush1.msra.mxu0 %v486
    %592 = vmatprep.subr.mxu0 0.0
    %593 = vmatpush1.msra.mxu0 %v487
    %594 = vmatprep.subr.mxu0 0.0
    %595 = vmatpush1.msra.mxu0 %v488
    %596 = vmatprep.subr.mxu0 0.0
    %597 = vmatpush1.msra.mxu0 %v489
    %598 = vmatprep.subr.mxu0 0.0
    %599 = vmatpush1.msra.mxu0 %v490
    %600 = vmatprep.subr.mxu0 0.0
    %601 = vmatpush1.msra.mxu0 %v491
    %602 = vmatprep.subr.mxu0 0.0
    %603 = vmatpush1.msra.mxu0 %v492
    %604 = vmatprep.subr.mxu0 0.0
    %605 = vmatpush1.msra.mxu0 %v493
    %606 = vmatprep.subr.mxu0 0.0
    %607 = vmatpush1.msra.mxu0 %v494
    %608 = vmatprep.subr.mxu0 0.0
    %609 = vmatpush1.msra.mxu0 %v495
    %610 = vmatprep.subr.mxu0 0.0
    %611 = vmatpush1.msra.mxu0 %v496
    %612 = vmatprep.subr.mxu0 0.0
    %613 = vmatpush1.msra.mxu0 %v497
    %614 = vmatprep.subr.mxu0 0.0
    %615 = vmatpush1.msra.mxu0 %v498
    %616 = vmatprep.subr.mxu0 0.0
    %617 = vmatpush1.msra.mxu0 %v499
    %618 = vmatprep.subr.mxu0 0.0
    %619 = vmatpush1.msra.mxu0 %v500
    %620 = vmatprep.subr.mxu0 0.0
    %621 = vmatpush1.msra.mxu0 %v501
    %622 = vmatprep.subr.mxu0 0.0
    %623 = vmatpush1.msra.mxu0 %v502
    %624 = vmatprep.subr.mxu0 0.0
    %625 = vmatpush1.msra.mxu0 %v503
    %626 = vmatprep.subr.mxu0 0.0
    %627 = vmatpush1.msra.mxu0 %v504
    %628 = vmatprep.subr.mxu0 0.0
    %629 = vmatpush1.msra.mxu0 %v505
    %630 = vmatprep.subr.mxu0 0.0
    %631 = vmatpush1.msra.mxu0 %v506
    %632 = vmatprep.mubr.f32.mxu0 %v562
    %633 = vmatmul.mubr.f32.gmra.mrb[0].mxu0 %v554
    %v634 = vpop.f32.mrb[0].mxu0
    %v635 = vadd.f32 %v544, %v634
    %v636 = vpop.f32.mrb[0].mxu0
    %637 = vdwg.mxu0
    %638 = vmatprep.subr.mxu0 0.0
    %639 = vmatpush1.msra.mxu0 %v507
    %640 = vmatprep.subr.mxu0 0.0
    %641 = vmatpush1.msra.mxu0 %v508
    %642 = vmatprep.subr.mxu0 0.0
    %643 = vmatpush1.msra.mxu0 %v509
    %644 = vmatprep.subr.mxu0 0.0
    %645 = vmatpush1.msra.mxu0 %v510
    %646 = vmatprep.subr.mxu0 0.0
    %647 = vmatpush1.msra.mxu0 %v511
    %648 = vmatprep.subr.mxu0 0.0
    %649 = vmatpush1.msra.mxu0 %v512
    %650 = vmatprep.subr.mxu0 0.0
    %651 = vmatpush1.msra.mxu0 %v513
    %652 = vmatprep.subr.mxu0 0.0
    %653 = vmatpush1.msra.mxu0 %v514
    %654 = vmatprep.subr.mxu0 0.0
    %655 = vmatpush1.msra.mxu0 %v515
    %656 = vmatprep.subr.mxu0 0.0
    %657 = vmatpush1.msra.mxu0 %v516
    %658 = vmatprep.subr.mxu0 0.0
    %659 = vmatpush1.msra.mxu0 %v517
    %660 = vmatprep.subr.mxu0 0.0
    %661 = vmatpush1.msra.mxu0 %v518
    %662 = vmatprep.subr.mxu0 0.0
    %663 = vmatpush1.msra.mxu0 %v519
    %664 = vmatprep.subr.mxu0 0.0
    %665 = vmatpush1.msra.mxu0 %v520
    %666 = vmatprep.subr.mxu0 0.0
    %667 = vmatpush1.msra.mxu0 %v521
    %668 = vmatprep.subr.mxu0 0.0
    %669 = vmatpush1.msra.mxu0 %v522
    %670 = vmatprep.subr.mxu0 0.0
    %671 = vmatpush1.msra.mxu0 %v523
    %672 = vmatprep.subr.mxu0 0.0
    %673 = vmatpush1.msra.mxu0 %v524
    %674 = vmatprep.subr.mxu0 0.0
    %675 = vmatpush1.msra.mxu0 %v525
    %676 = vmatprep.subr.mxu0 0.0
    %677 = vmatpush1.msra.mxu0 %v526
    %678 = vmatprep.subr.mxu0 0.0
    %679 = vmatpush1.msra.mxu0 %v527
    %680 = vmatprep.subr.mxu0 0.0
    %681 = vmatpush1.msra.mxu0 %v528
    %682 = vmatprep.subr.mxu0 0.0
    %683 = vmatpush1.msra.mxu0 %v529
    %684 = vmatprep.subr.mxu0 0.0
    %685 = vmatpush1.msra.mxu0 %v530
    %686 = vmatprep.subr.mxu0 0.0
    %687 = vmatpush1.msra.mxu0 %v531
    %688 = vmatprep.subr.mxu0 0.0
    %689 = vmatpush1.msra.mxu0 %v532
    %690 = vmatprep.subr.mxu0 0.0
    %691 = vmatpush1.msra.mxu0 %v533
    %692 = vmatprep.subr.mxu0 0.0
    %693 = vmatpush1.msra.mxu0 %v534
    %694 = vmatprep.subr.mxu0 0.0
    %695 = vmatpush1.msra.mxu0 %v535
    %696 = vmatprep.subr.mxu0 0.0
    %697 = vmatpush1.msra.mxu0 %v536
    %698 = vmatprep.subr.mxu0 0.0
    %699 = vmatpush1.msra.mxu0 %v537
    %700 = vmatprep.subr.mxu0 0.0
    %701 = vmatpush1.msra.mxu0 %v538
    %702 = vmatprep.mubr.f32.mxu0 %v563
    %703 = vmatmul.mubr.f32.gmra.mrb[0].mxu0 %v561
    %v704 = vpop.f32.mrb[0].mxu0
    %v705 = vadd.f32 %v635, %v704
    %v706 = vpop.f32.mrb[0].mxu0
    %707 = vdwg.mxu0
    %vm708 = vcmask 74752
    %v709 = vsel %vm708, %v705, -inf
    %710 = vmax.xlane.f32.xlu0 %v709
    %v711 = vpop.xlane.xlu0 %710
    %v712 = vsub.f32 %v705, %v711
    %v713 = vmul.f32 %v712, 1.442695
    %v714 = vpow.pop %v713
    %v715 = vsel %vm708, %v714, 0.0
    %716 = vadd.xlane.f32.xlu0 %v715
    %v717 = vpop.xlane.xlu0 %716
    %v718 = vrcp.pop %v717
    %v719 = vmul.f32 %v714, %v718
    %720 = vst.msk [vmem:[#allocation4] sm:$0x3] %vm708, %v719
    // Predicated region
    $region22: #{net_forward.1} parent=1 // pred_check
      _
    $region23: #{net_forward.1} parent=1 // pred_check_branch
      %722 = sbr.rel (0) target = $region25
    $region24: #{net_forward.1} parent=1 // pred_region
      %s724 = ssub.s32 32, 32
      %725 = vsyncadd [#allocation5], %s724
      %s727 = sshll.u32 [#allocation4], 4
      %s728 = int_to_ptr.vmem [resolvable:$true] %s727
      %730 = dma.vmem_to_hbm [thread:$0]  %s728, 32, %s5, [#allocation5]
    $region25: #{net_forward.1} parent=1 // pred_fallthru
      _
    // Predicated region
    $region26: #{net_forward.1} parent=1 // pred_check
      _
    $region27: #{net_forward.1} parent=1 // pred_check_branch
      %732 = sbr.rel (0) target = $region29
    $region28: #{net_forward.1} parent=1 // pred_region
      %733 = dma.done [#allocation5], 32
    $region29: #{net_forward.1} parent=1 // pred_fallthru
      _
    %734 = vsyncpa [#allocation5], 1

</llo_original>
